<compile_context>
chip_gen: v6e
topology: v6e:2x2x1
jax: 0.10.0
libtpu: 0.0.40
codegen_flags: <defaults>
</compile_context>

<pallas_src>
import jax
import jax.numpy as jnp
from jax.experimental import pallas as pl
from jax.experimental.pallas import tpu as pltpu


def _vpu_layer(w, b, h_in):
    """w: (out, K) weights, b: (out, 1) bias, h_in: (K, TN) activations -> (out, TN)."""
    k_in = w.shape[1]
    # Seed the accumulator with the bias (fused bias add), then K broadcast FMAs:
    #   acc[m, n] += w[m, k] * h_in[k, n]
    acc = b + w[:, 0:1] * h_in[0:1, :]
    for k in range(1, k_in):
        acc = acc + w[:, k : k + 1] * h_in[k : k + 1, :]
    return jax.nn.sigmoid(acc)


def mlp_sigmoid_kernel(x_ref, w1_ref, b1_ref, w2_ref, b2_ref, w3_ref, b3_ref, o_ref):
    x = x_ref[...]                                   # (8, TN) lane-major batch tile
    h1 = _vpu_layer(w1_ref[...], b1_ref[...], x)     # (6, TN)
    h2 = _vpu_layer(w2_ref[...], b2_ref[...], h1)    # (4, TN)
    y = _vpu_layer(w3_ref[...], b3_ref[...], h2)     # (1, TN) lane-dense output
    o_ref[...] = y.astype(o_ref.dtype)


def mlp_forward(x, w1, b1, w2, b2, w3, b3, *, block_n=1024):
    """x: (N, 8) f32; weights in torch layout (out, in); biases (out, 1)."""
    n, in_f = x.shape
    assert in_f == 8

    # Batch tile: multiple of 128 lanes, capped at block_n (tiny vs 64 MiB v7x VMEM).
    n_128 = ((n + 127) // 128) * 128
    tn = min(block_n, n_128)
    n_pad = ((n + tn - 1) // tn) * tn

    # Lane-major layout; zero-pad the tail tile (padded lanes are discarded below).
    xt = jnp.zeros((in_f, n_pad), jnp.float32).at[:, :n].set(x.T.astype(jnp.float32))

    weight_bytes = 4 * (w1.size + b1.size + w2.size + b2.size + w3.size + b3.size)
    cost = pl.CostEstimate(
        flops=2 * n_pad * (8 * 6 + 6 * 4 + 4 * 1),
        transcendentals=11 * n_pad,
        bytes_accessed=n_pad * (8 + 1) * 4 + weight_bytes,
    )

    # Weights / biases: single block, same index every step -> VMEM-resident.
    resident = lambda a: pl.BlockSpec(a.shape, lambda i: (0, 0))

    out = pl.pallas_call(
        mlp_sigmoid_kernel,
        out_shape=jax.ShapeDtypeStruct((1, n_pad), jnp.float32),
        grid=(n_pad // tn,),
        in_specs=[
            pl.BlockSpec((in_f, tn), lambda i: (0, i)),
            resident(w1), resident(b1),
            resident(w2), resident(b2),
            resident(w3), resident(b3),
        ],
        out_specs=pl.BlockSpec((1, tn), lambda i: (0, i)),
        compiler_params=pltpu.CompilerParams(dimension_semantics=("parallel",)),
        cost_estimate=cost,
    )(xt, w1, b1, w2, b2, w3, b3)

    return out[0, :n].reshape(n, 1)


def init_linear(key, in_f, out_f):
    # Deterministic init mimicking torch.nn.Linear's uniform(-1/sqrt(in), 1/sqrt(in)).
    kw, kb = jax.random.split(key)
    bound = 1.0 / jnp.sqrt(jnp.float32(in_f))
    w = jax.random.uniform(kw, (out_f, in_f), jnp.float32, -bound, bound)  # torch layout
    b = jax.random.uniform(kb, (out_f, 1), jnp.float32, -bound, bound)
    return w, b


if __name__ == "__main__":
    key = jax.random.PRNGKey(0)
    kx, k1, k2, k3 = jax.random.split(key, 4)

    batch = 16
    x = jax.random.normal(kx, (batch, 8), jnp.float32)

    w1, b1 = init_linear(k1, 8, 6)
    w2, b2 = init_linear(k2, 6, 4)
    w3, b3 = init_linear(k3, 4, 1)

    y = mlp_forward(x, w1, b1, w2, b2, w3, b3)
    y = jax.block_until_ready(y)

    # Plain-JAX reference (same math as the PyTorch forward: sigmoid(x @ W.T + b)).
    h1 = jax.nn.sigmoid(x @ w1.T + b1.T)
    h2 = jax.nn.sigmoid(h1 @ w2.T + b2.T)
    y_ref = jax.nn.sigmoid(h2 @ w3.T + b3.T)

    assert y.shape == (batch, 1)
    assert jnp.allclose(y, y_ref, atol=1e-5, rtol=1e-4), float(jnp.max(jnp.abs(y - y_ref)))

    print("KERNEL_OK")
</pallas_src>

<mosaic_0001>
module attributes {stable_mosaic.version = 11 : i64} {
  func.func @mlp_sigmoid_kernel(%arg0: i32, %arg1: memref<8x128xf32, #tpu.memory_space<vmem>>, %arg2: memref<6x8xf32, #tpu.memory_space<vmem>>, %arg3: memref<6x1xf32, #tpu.memory_space<vmem>>, %arg4: memref<4x6xf32, #tpu.memory_space<vmem>>, %arg5: memref<4x1xf32, #tpu.memory_space<vmem>>, %arg6: memref<1x4xf32, #tpu.memory_space<vmem>>, %arg7: memref<1x1xf32, #tpu.memory_space<vmem>>, %arg8: memref<1x128xf32, #tpu.memory_space<vmem>>) attributes {dimension_semantics = [#tpu.dimension_semantics<parallel>], iteration_bounds = array<i64: 1>, scalar_prefetch = 0 : i64, scratch_operands = 0 : i64, tpu.core_type = #tpu.core_type<tc>, window_params = [{transform_indices = @transform_0, window_bounds = array<i64: 8, 128>}, {pipeline_mode = #tpu.pipeline_mode<synchronous>, transform_indices = @transform_1, window_bounds = array<i64: 6, 8>}, {pipeline_mode = #tpu.pipeline_mode<synchronous>, transform_indices = @transform_2, window_bounds = array<i64: 6, 1>}, {pipeline_mode = #tpu.pipeline_mode<synchronous>, transform_indices = @transform_3, window_bounds = array<i64: 4, 6>}, {pipeline_mode = #tpu.pipeline_mode<synchronous>, transform_indices = @transform_4, window_bounds = array<i64: 4, 1>}, {pipeline_mode = #tpu.pipeline_mode<synchronous>, transform_indices = @transform_5, window_bounds = array<i64: 1, 4>}, {pipeline_mode = #tpu.pipeline_mode<synchronous>, transform_indices = @transform_6, window_bounds = array<i64: 1, 1>}, {transform_indices = @transform_7, window_bounds = array<i64: 1, 128>}]} {
    %c0 = arith.constant 0 : index
    %c0_0 = arith.constant 0 : index
    %0 = vector.load %arg1[%c0, %c0_0] : memref<8x128xf32, #tpu.memory_space<vmem>>, vector<8x128xf32>
    %c0_1 = arith.constant 0 : index
    %c0_2 = arith.constant 0 : index
    %1 = vector.load %arg2[%c0_1, %c0_2] : memref<6x8xf32, #tpu.memory_space<vmem>>, vector<6x8xf32>
    %c0_3 = arith.constant 0 : index
    %c0_4 = arith.constant 0 : index
    %2 = vector.load %arg3[%c0_3, %c0_4] : memref<6x1xf32, #tpu.memory_space<vmem>>, vector<6x1xf32>
    %3 = vector.extract_strided_slice %1 {offsets = [0, 0], sizes = [6, 1], strides = [1, 1]} : vector<6x8xf32> to vector<6x1xf32>
    %4 = vector.extract_strided_slice %0 {offsets = [0, 0], sizes = [1, 128], strides = [1, 1]} : vector<8x128xf32> to vector<1x128xf32>
    %5 = vector.broadcast %3 : vector<6x1xf32> to vector<6x128xf32>
    %6 = vector.broadcast %4 : vector<1x128xf32> to vector<6x128xf32>
    %7 = arith.mulf %5, %6 : vector<6x128xf32>
    %8 = vector.broadcast %2 : vector<6x1xf32> to vector<6x128xf32>
    %9 = arith.addf %8, %7 : vector<6x128xf32>
    %10 = vector.extract_strided_slice %1 {offsets = [0, 1], sizes = [6, 1], strides = [1, 1]} : vector<6x8xf32> to vector<6x1xf32>
    %11 = vector.extract_strided_slice %0 {offsets = [1, 0], sizes = [1, 128], strides = [1, 1]} : vector<8x128xf32> to vector<1x128xf32>
    %12 = vector.broadcast %10 : vector<6x1xf32> to vector<6x128xf32>
    %13 = vector.broadcast %11 : vector<1x128xf32> to vector<6x128xf32>
    %14 = arith.mulf %12, %13 : vector<6x128xf32>
    %15 = arith.addf %9, %14 : vector<6x128xf32>
    %16 = vector.extract_strided_slice %1 {offsets = [0, 2], sizes = [6, 1], strides = [1, 1]} : vector<6x8xf32> to vector<6x1xf32>
    %17 = vector.extract_strided_slice %0 {offsets = [2, 0], sizes = [1, 128], strides = [1, 1]} : vector<8x128xf32> to vector<1x128xf32>
    %18 = vector.broadcast %16 : vector<6x1xf32> to vector<6x128xf32>
    %19 = vector.broadcast %17 : vector<1x128xf32> to vector<6x128xf32>
    %20 = arith.mulf %18, %19 : vector<6x128xf32>
    %21 = arith.addf %15, %20 : vector<6x128xf32>
    %22 = vector.extract_strided_slice %1 {offsets = [0, 3], sizes = [6, 1], strides = [1, 1]} : vector<6x8xf32> to vector<6x1xf32>
    %23 = vector.extract_strided_slice %0 {offsets = [3, 0], sizes = [1, 128], strides = [1, 1]} : vector<8x128xf32> to vector<1x128xf32>
    %24 = vector.broadcast %22 : vector<6x1xf32> to vector<6x128xf32>
    %25 = vector.broadcast %23 : vector<1x128xf32> to vector<6x128xf32>
    %26 = arith.mulf %24, %25 : vector<6x128xf32>
    %27 = arith.addf %21, %26 : vector<6x128xf32>
    %28 = vector.extract_strided_slice %1 {offsets = [0, 4], sizes = [6, 1], strides = [1, 1]} : vector<6x8xf32> to vector<6x1xf32>
    %29 = vector.extract_strided_slice %0 {offsets = [4, 0], sizes = [1, 128], strides = [1, 1]} : vector<8x128xf32> to vector<1x128xf32>
    %30 = vector.broadcast %28 : vector<6x1xf32> to vector<6x128xf32>
    %31 = vector.broadcast %29 : vector<1x128xf32> to vector<6x128xf32>
    %32 = arith.mulf %30, %31 : vector<6x128xf32>
    %33 = arith.addf %27, %32 : vector<6x128xf32>
    %34 = vector.extract_strided_slice %1 {offsets = [0, 5], sizes = [6, 1], strides = [1, 1]} : vector<6x8xf32> to vector<6x1xf32>
    %35 = vector.extract_strided_slice %0 {offsets = [5, 0], sizes = [1, 128], strides = [1, 1]} : vector<8x128xf32> to vector<1x128xf32>
    %36 = vector.broadcast %34 : vector<6x1xf32> to vector<6x128xf32>
    %37 = vector.broadcast %35 : vector<1x128xf32> to vector<6x128xf32>
    %38 = arith.mulf %36, %37 : vector<6x128xf32>
    %39 = arith.addf %33, %38 : vector<6x128xf32>
    %40 = vector.extract_strided_slice %1 {offsets = [0, 6], sizes = [6, 1], strides = [1, 1]} : vector<6x8xf32> to vector<6x1xf32>
    %41 = vector.extract_strided_slice %0 {offsets = [6, 0], sizes = [1, 128], strides = [1, 1]} : vector<8x128xf32> to vector<1x128xf32>
    %42 = vector.broadcast %40 : vector<6x1xf32> to vector<6x128xf32>
    %43 = vector.broadcast %41 : vector<1x128xf32> to vector<6x128xf32>
    %44 = arith.mulf %42, %43 : vector<6x128xf32>
    %45 = arith.addf %39, %44 : vector<6x128xf32>
    %46 = vector.extract_strided_slice %1 {offsets = [0, 7], sizes = [6, 1], strides = [1, 1]} : vector<6x8xf32> to vector<6x1xf32>
    %47 = vector.extract_strided_slice %0 {offsets = [7, 0], sizes = [1, 128], strides = [1, 1]} : vector<8x128xf32> to vector<1x128xf32>
    %48 = vector.broadcast %46 : vector<6x1xf32> to vector<6x128xf32>
    %49 = vector.broadcast %47 : vector<1x128xf32> to vector<6x128xf32>
    %50 = arith.mulf %48, %49 : vector<6x128xf32>
    %51 = arith.addf %45, %50 : vector<6x128xf32>
    %52 = arith.negf %51 : vector<6x128xf32>
    %53 = math.exp %52 : vector<6x128xf32>
    %cst = arith.constant 1.000000e+00 : f32
    %54 = vector.broadcast %cst : f32 to vector<6x128xf32>
    %55 = arith.addf %54, %53 : vector<6x128xf32>
    %56 = arith.divf %54, %55 : vector<6x128xf32>
    %c0_5 = arith.constant 0 : index
    %c0_6 = arith.constant 0 : index
    %57 = vector.load %arg4[%c0_5, %c0_6] : memref<4x6xf32, #tpu.memory_space<vmem>>, vector<4x6xf32>
    %c0_7 = arith.constant 0 : index
    %c0_8 = arith.constant 0 : index
    %58 = vector.load %arg5[%c0_7, %c0_8] : memref<4x1xf32, #tpu.memory_space<vmem>>, vector<4x1xf32>
    %59 = vector.extract_strided_slice %57 {offsets = [0, 0], sizes = [4, 1], strides = [1, 1]} : vector<4x6xf32> to vector<4x1xf32>
    %60 = vector.extract_strided_slice %56 {offsets = [0, 0], sizes = [1, 128], strides = [1, 1]} : vector<6x128xf32> to vector<1x128xf32>
    %61 = vector.broadcast %59 : vector<4x1xf32> to vector<4x128xf32>
    %62 = vector.broadcast %60 : vector<1x128xf32> to vector<4x128xf32>
    %63 = arith.mulf %61, %62 : vector<4x128xf32>
    %64 = vector.broadcast %58 : vector<4x1xf32> to vector<4x128xf32>
    %65 = arith.addf %64, %63 : vector<4x128xf32>
    %66 = vector.extract_strided_slice %57 {offsets = [0, 1], sizes = [4, 1], strides = [1, 1]} : vector<4x6xf32> to vector<4x1xf32>
    %67 = vector.extract_strided_slice %56 {offsets = [1, 0], sizes = [1, 128], strides = [1, 1]} : vector<6x128xf32> to vector<1x128xf32>
    %68 = vector.broadcast %66 : vector<4x1xf32> to vector<4x128xf32>
    %69 = vector.broadcast %67 : vector<1x128xf32> to vector<4x128xf32>
    %70 = arith.mulf %68, %69 : vector<4x128xf32>
    %71 = arith.addf %65, %70 : vector<4x128xf32>
    %72 = vector.extract_strided_slice %57 {offsets = [0, 2], sizes = [4, 1], strides = [1, 1]} : vector<4x6xf32> to vector<4x1xf32>
    %73 = vector.extract_strided_slice %56 {offsets = [2, 0], sizes = [1, 128], strides = [1, 1]} : vector<6x128xf32> to vector<1x128xf32>
    %74 = vector.broadcast %72 : vector<4x1xf32> to vector<4x128xf32>
    %75 = vector.broadcast %73 : vector<1x128xf32> to vector<4x128xf32>
    %76 = arith.mulf %74, %75 : vector<4x128xf32>
    %77 = arith.addf %71, %76 : vector<4x128xf32>
    %78 = vector.extract_strided_slice %57 {offsets = [0, 3], sizes = [4, 1], strides = [1, 1]} : vector<4x6xf32> to vector<4x1xf32>
    %79 = vector.extract_strided_slice %56 {offsets = [3, 0], sizes = [1, 128], strides = [1, 1]} : vector<6x128xf32> to vector<1x128xf32>
    %80 = vector.broadcast %78 : vector<4x1xf32> to vector<4x128xf32>
    %81 = vector.broadcast %79 : vector<1x128xf32> to vector<4x128xf32>
    %82 = arith.mulf %80, %81 : vector<4x128xf32>
    %83 = arith.addf %77, %82 : vector<4x128xf32>
    %84 = vector.extract_strided_slice %57 {offsets = [0, 4], sizes = [4, 1], strides = [1, 1]} : vector<4x6xf32> to vector<4x1xf32>
    %85 = vector.extract_strided_slice %56 {offsets = [4, 0], sizes = [1, 128], strides = [1, 1]} : vector<6x128xf32> to vector<1x128xf32>
    %86 = vector.broadcast %84 : vector<4x1xf32> to vector<4x128xf32>
    %87 = vector.broadcast %85 : vector<1x128xf32> to vector<4x128xf32>
    %88 = arith.mulf %86, %87 : vector<4x128xf32>
    %89 = arith.addf %83, %88 : vector<4x128xf32>
    %90 = vector.extract_strided_slice %57 {offsets = [0, 5], sizes = [4, 1], strides = [1, 1]} : vector<4x6xf32> to vector<4x1xf32>
    %91 = vector.extract_strided_slice %56 {offsets = [5, 0], sizes = [1, 128], strides = [1, 1]} : vector<6x128xf32> to vector<1x128xf32>
    %92 = vector.broadcast %90 : vector<4x1xf32> to vector<4x128xf32>
    %93 = vector.broadcast %91 : vector<1x128xf32> to vector<4x128xf32>
    %94 = arith.mulf %92, %93 : vector<4x128xf32>
    %95 = arith.addf %89, %94 : vector<4x128xf32>
    %96 = arith.negf %95 : vector<4x128xf32>
    %97 = math.exp %96 : vector<4x128xf32>
    %cst_9 = arith.constant 1.000000e+00 : f32
    %98 = vector.broadcast %cst_9 : f32 to vector<4x128xf32>
    %99 = arith.addf %98, %97 : vector<4x128xf32>
    %100 = arith.divf %98, %99 : vector<4x128xf32>
    %c0_10 = arith.constant 0 : index
    %c0_11 = arith.constant 0 : index
    %101 = vector.load %arg6[%c0_10, %c0_11] : memref<1x4xf32, #tpu.memory_space<vmem>>, vector<1x4xf32>
    %c0_12 = arith.constant 0 : index
    %c0_13 = arith.constant 0 : index
    %102 = vector.load %arg7[%c0_12, %c0_13] : memref<1x1xf32, #tpu.memory_space<vmem>>, vector<1x1xf32>
    %103 = vector.extract_strided_slice %101 {offsets = [0, 0], sizes = [1, 1], strides = [1, 1]} : vector<1x4xf32> to vector<1x1xf32>
    %104 = vector.extract_strided_slice %100 {offsets = [0, 0], sizes = [1, 128], strides = [1, 1]} : vector<4x128xf32> to vector<1x128xf32>
    %105 = vector.broadcast %103 : vector<1x1xf32> to vector<1x128xf32>
    %106 = arith.mulf %105, %104 : vector<1x128xf32>
    %107 = vector.broadcast %102 : vector<1x1xf32> to vector<1x128xf32>
    %108 = arith.addf %107, %106 : vector<1x128xf32>
    %109 = vector.extract_strided_slice %101 {offsets = [0, 1], sizes = [1, 1], strides = [1, 1]} : vector<1x4xf32> to vector<1x1xf32>
    %110 = vector.extract_strided_slice %100 {offsets = [1, 0], sizes = [1, 128], strides = [1, 1]} : vector<4x128xf32> to vector<1x128xf32>
    %111 = vector.broadcast %109 : vector<1x1xf32> to vector<1x128xf32>
    %112 = arith.mulf %111, %110 : vector<1x128xf32>
    %113 = arith.addf %108, %112 : vector<1x128xf32>
    %114 = vector.extract_strided_slice %101 {offsets = [0, 2], sizes = [1, 1], strides = [1, 1]} : vector<1x4xf32> to vector<1x1xf32>
    %115 = vector.extract_strided_slice %100 {offsets = [2, 0], sizes = [1, 128], strides = [1, 1]} : vector<4x128xf32> to vector<1x128xf32>
    %116 = vector.broadcast %114 : vector<1x1xf32> to vector<1x128xf32>
    %117 = arith.mulf %116, %115 : vector<1x128xf32>
    %118 = arith.addf %113, %117 : vector<1x128xf32>
    %119 = vector.extract_strided_slice %101 {offsets = [0, 3], sizes = [1, 1], strides = [1, 1]} : vector<1x4xf32> to vector<1x1xf32>
    %120 = vector.extract_strided_slice %100 {offsets = [3, 0], sizes = [1, 128], strides = [1, 1]} : vector<4x128xf32> to vector<1x128xf32>
    %121 = vector.broadcast %119 : vector<1x1xf32> to vector<1x128xf32>
    %122 = arith.mulf %121, %120 : vector<1x128xf32>
    %123 = arith.addf %118, %122 : vector<1x128xf32>
    %124 = arith.negf %123 : vector<1x128xf32>
    %125 = math.exp %124 : vector<1x128xf32>
    %cst_14 = arith.constant 1.000000e+00 : f32
    %126 = vector.broadcast %cst_14 : f32 to vector<1x128xf32>
    %127 = arith.addf %126, %125 : vector<1x128xf32>
    %128 = arith.divf %126, %127 : vector<1x128xf32>
    %c0_15 = arith.constant 0 : index
    %c0_16 = arith.constant 0 : index
    %129 = vector.load %arg8[%c0_15, %c0_16] : memref<1x128xf32, #tpu.memory_space<vmem>>, vector<1x128xf32>
    tpu.vector_store %arg8[%c0_15, %c0_16], %128 {strides = array<i32>} : memref<1x128xf32, #tpu.memory_space<vmem>>, vector<1x128xf32>,
    return
  }
  func.func @transform_0(%arg0: i32) -> (i32, i32) {
    %c0_i32 = arith.constant 0 : i32
    %c0_i32_0 = arith.constant 0 : i32
    return %c0_i32, %arg0 : i32, i32
  }
  func.func @transform_1(%arg0: i32) -> (i32, i32) {
    %c0_i32 = arith.constant 0 : i32
    %c0_i32_0 = arith.constant 0 : i32
    %c0_i32_1 = arith.constant 0 : i32
    return %c0_i32, %c0_i32_0 : i32, i32
  }
  func.func @transform_2(%arg0: i32) -> (i32, i32) {
    %c0_i32 = arith.constant 0 : i32
    %c0_i32_0 = arith.constant 0 : i32
    %c0_i32_1 = arith.constant 0 : i32
    return %c0_i32, %c0_i32_0 : i32, i32
  }
  func.func @transform_3(%arg0: i32) -> (i32, i32) {
    %c0_i32 = arith.constant 0 : i32
    %c0_i32_0 = arith.constant 0 : i32
    %c0_i32_1 = arith.constant 0 : i32
    return %c0_i32, %c0_i32_0 : i32, i32
  }
  func.func @transform_4(%arg0: i32) -> (i32, i32) {
    %c0_i32 = arith.constant 0 : i32
    %c0_i32_0 = arith.constant 0 : i32
    %c0_i32_1 = arith.constant 0 : i32
    return %c0_i32, %c0_i32_0 : i32, i32
  }
  func.func @transform_5(%arg0: i32) -> (i32, i32) {
    %c0_i32 = arith.constant 0 : i32
    %c0_i32_0 = arith.constant 0 : i32
    %c0_i32_1 = arith.constant 0 : i32
    return %c0_i32, %c0_i32_0 : i32, i32
  }
  func.func @transform_6(%arg0: i32) -> (i32, i32) {
    %c0_i32 = arith.constant 0 : i32
    %c0_i32_0 = arith.constant 0 : i32
    %c0_i32_1 = arith.constant 0 : i32
    return %c0_i32, %c0_i32_0 : i32, i32
  }
  func.func @transform_7(%arg0: i32) -> (i32, i32) {
    %c0_i32 = arith.constant 0 : i32
    %c0_i32_0 = arith.constant 0 : i32
    return %c0_i32, %arg0 : i32, i32
  }
}

</mosaic_0001>

<llo_original>
// kernel: tpu_custom_call.1
$region0: #{tpu_custom_call.1}
  #allocation0 [shape = 'u32[]', space=smem, size = 0x4, offset = 0x4, fixed_abs, tag = 'smem constant byte address 0x4 - core index']
  #allocation1 [shape = 'u32[144,128]{1,0:T(1,128)}', space=vmem, size = 0x12000, scoped, tag = 'internal scratch']
  #allocation2 [shape = 'f32[1,1]{1,0:T(1,128)S(1)}', space=vmem, size = 0x200, scoped, tag = 'scoped memory for tpu_custom_call.1']
  %s0 = inlined_call_operand.vmem [shape: f32[8,128], index: 0, kind: input, shape index: {}]
  %s1 = inlined_call_operand.vmem [shape: f32[6,8], index: 1, kind: input, shape index: {}]
  %s2 = inlined_call_operand.vmem [shape: f32[6,1], index: 2, kind: input, shape index: {}]
  %s3 = inlined_call_operand.vmem [shape: f32[4,6], index: 3, kind: input, shape index: {}]
  %s4 = inlined_call_operand.vmem [shape: f32[4,1], index: 4, kind: input, shape index: {}]
  %s5 = inlined_call_operand.vmem [shape: f32[1,4], index: 5, kind: input, shape index: {}]
  %s6 = inlined_call_operand.<no memory space> [shape: f32[1,1], index: 6, kind: input, shape index: {}]
  %s7 = inlined_call_operand.hbm [shape: f32[1,128], index: 7, kind: output, shape index: {}]
  %s8 = sld [smem:[#allocation0]]
  $region38: #{tpu_custom_call.1} parent=0
    _
  %s10 = ssub.s32 1, %s8
  %s11 = scalar_select 0, %s10, %s8
  %v12 = vstv %s6
  %13 = vst [vmem:[#allocation2] sm:$0x1] %v12
  $region1: #{tpu_custom_call.1} parent=0
    #allocation3 [shape = 'u8[512]{0}', space=vmem, size = 0x400, scoped, tag = 'output window, operand 0, single buffered']
    #allocation4 [shape = 's32[1]{0}', space=sflag, size = 0x4, scoped, tag = 'scoped memory for tpu_custom_call.1']
    %14 = vsyncpa [#allocation4], 0
    // Predicated region
    $region2: #{tpu_custom_call.1} parent=1 // pred_check
      _
    $region3: #{tpu_custom_call.1} parent=1 // pred_check_branch
      %16 = sbr.rel (0) target = $region5
    $region4: #{tpu_custom_call.1} parent=1 // pred_region
      _
    $region5: #{tpu_custom_call.1} parent=1 // pred_fallthru
      _
    // Predicated region
    $region6: #{tpu_custom_call.1} parent=1 // pred_check
      _
    $region7: #{tpu_custom_call.1} parent=1 // pred_check_branch
      %18 = sbr.rel (0) target = $region9
    $region8: #{tpu_custom_call.1} parent=1 // pred_region
      _
    $region9: #{tpu_custom_call.1} parent=1 // pred_fallthru
      _
    // Predicated region
    $region10: #{tpu_custom_call.1} parent=1 // pred_check
      _
    $region11: #{tpu_custom_call.1} parent=1 // pred_check_branch
      %20 = sbr.rel (0) target = $region13
    $region12: #{tpu_custom_call.1} parent=1 // pred_region
      _
    $region13: #{tpu_custom_call.1} parent=1 // pred_fallthru
      _
    // Predicated region
    $region14: #{tpu_custom_call.1} parent=1 // pred_check
      _
    $region15: #{tpu_custom_call.1} parent=1 // pred_check_branch
      %22 = sbr.rel (0) target = $region17
    $region16: #{tpu_custom_call.1} parent=1 // pred_region
      _
    $region17: #{tpu_custom_call.1} parent=1 // pred_fallthru
      _
    // Predicated region
    $region18: #{tpu_custom_call.1} parent=1 // pred_check
      _
    $region19: #{tpu_custom_call.1} parent=1 // pred_check_branch
      %24 = sbr.rel (0) target = $region21
    $region20: #{tpu_custom_call.1} parent=1 // pred_region
      _
    $region21: #{tpu_custom_call.1} parent=1 // pred_fallthru
      _
    // Predicated region
    $region22: #{tpu_custom_call.1} parent=1 // pred_check
      _
    $region23: #{tpu_custom_call.1} parent=1 // pred_check_branch
      %26 = sbr.rel (0) target = $region25
    $region24: #{tpu_custom_call.1} parent=1 // pred_region
      _
    $region25: #{tpu_custom_call.1} parent=1 // pred_fallthru
      _
    // Predicated region
    $region26: #{tpu_custom_call.1} parent=1 // pred_check
      _
    $region27: #{tpu_custom_call.1} parent=1 // pred_check_branch
      %28 = sbr.rel (0) target = $region29
    $region28: #{tpu_custom_call.1} parent=1 // pred_region
      _
    $region29: #{tpu_custom_call.1} parent=1 // pred_fallthru
      _
    %v29 = vld [vmem:[%s0] sm:$0xff]
    %v30 = vld [vmem:[%s1] sm:$0x3f]
    %v31 = vld [vmem:[%s2] sm:$0x3f]
    %33 = vset.pattern.permute.xlu0 0
    %34 = vperm.xlu0 %33, %v30
    %v35 = vpop.permute.xlu0 %34
    %v37 = vlaneseq
    %v38 = vshrl.u32 %v37, 7
    %v39 = vsub.s32 0, %v38
    %v40 = vrot.slane %v29, %v39
    %v41 = vmul.f32 %v35, %v40
    %43 = vset.pattern.permute.xlu0 0
    %44 = vperm.xlu0 %43, %v31
    %v45 = vpop.permute.xlu0 %44
    %v47 = vadd.f32 %v45, %v41
    %48 = vset.pattern.permute.xlu0 1
    %49 = vperm.xlu0 %48, %v30
    %v50 = vpop.permute.xlu0 %49
    %v52 = vlaneseq
    %v53 = vshrl.u32 %v52, 7
    %v54 = vsub.s32 1, %v53
    %v55 = vrot.slane %v29, %v54
    %v56 = vmul.f32 %v50, %v55
    %v57 = vadd.f32 %v47, %v56
    %58 = vset.pattern.permute.xlu0 2
    %59 = vperm.xlu0 %58, %v30
    %v60 = vpop.permute.xlu0 %59
    %v62 = vlaneseq
    %v63 = vshrl.u32 %v62, 7
    %v64 = vsub.s32 2, %v63
    %v65 = vrot.slane %v29, %v64
    %v66 = vmul.f32 %v60, %v65
    %v67 = vadd.f32 %v57, %v66
    %68 = vset.pattern.permute.xlu0 3
    %69 = vperm.xlu0 %68, %v30
    %v70 = vpop.permute.xlu0 %69
    %v72 = vlaneseq
    %v73 = vshrl.u32 %v72, 7
    %v74 = vsub.s32 3, %v73
    %v75 = vrot.slane %v29, %v74
    %v76 = vmul.f32 %v70, %v75
    %v77 = vadd.f32 %v67, %v76
    %78 = vset.pattern.permute.xlu0 4
    %79 = vperm.xlu0 %78, %v30
    %v80 = vpop.permute.xlu0 %79
    %v82 = vlaneseq
    %v83 = vshrl.u32 %v82, 7
    %v84 = vsub.s32 4, %v83
    %v85 = vrot.slane %v29, %v84
    %v86 = vmul.f32 %v80, %v85
    %v87 = vadd.f32 %v77, %v86
    %88 = vset.pattern.permute.xlu0 5
    %89 = vperm.xlu0 %88, %v30
    %v90 = vpop.permute.xlu0 %89
    %v92 = vlaneseq
    %v93 = vshrl.u32 %v92, 7
    %v94 = vsub.s32 5, %v93
    %v95 = vrot.slane %v29, %v94
    %v96 = vmul.f32 %v90, %v95
    %v97 = vadd.f32 %v87, %v96
    %98 = vset.pattern.permute.xlu0 6
    %99 = vperm.xlu0 %98, %v30
    %v100 = vpop.permute.xlu0 %99
    %v102 = vlaneseq
    %v103 = vshrl.u32 %v102, 7
    %v104 = vsub.s32 6, %v103
    %v105 = vrot.slane %v29, %v104
    %v106 = vmul.f32 %v100, %v105
    %v107 = vadd.f32 %v97, %v106
    %108 = vset.pattern.permute.xlu0 7
    %109 = vperm.xlu0 %108, %v30
    %v110 = vpop.permute.xlu0 %109
    %v112 = vlaneseq
    %v113 = vshrl.u32 %v112, 7
    %v114 = vsub.s32 7, %v113
    %v115 = vrot.slane %v29, %v114
    %v116 = vmul.f32 %v110, %v115
    %v117 = vadd.f32 %v107, %v116
    %v118 = vxor.u32 %v117, 2147483648
    %v119 = vmul.f32 %v118, 1.442695
    %v120 = vpow.pop %v119
    %v121 = vadd.f32 %v120, 1.0
    %v122 = vrcp.pop %v121
    %v123 = vmul.f32 1.0, %v122
    %v124 = vld [vmem:[%s3] sm:$0xf]
    %v125 = vld [vmem:[%s4] sm:$0xf]
    %127 = vset.pattern.permute.xlu0 0
    %128 = vperm.xlu0 %127, %v124
    %v129 = vpop.permute.xlu0 %128
    %v131 = vlaneseq
    %v132 = vshrl.u32 %v131, 7
    %v133 = vsub.s32 0, %v132
    %v134 = vrot.slane %v123, %v133
    %v135 = vmul.f32 %v129, %v134
    %137 = vset.pattern.permute.xlu0 0
    %138 = vperm.xlu0 %137, %v125
    %v139 = vpop.permute.xlu0 %138
    %v141 = vadd.f32 %v139, %v135
    %142 = vset.pattern.permute.xlu0 1
    %143 = vperm.xlu0 %142, %v124
    %v144 = vpop.permute.xlu0 %143
    %v146 = vlaneseq
    %v147 = vshrl.u32 %v146, 7
    %v148 = vsub.s32 1, %v147
    %v149 = vrot.slane %v123, %v148
    %v150 = vmul.f32 %v144, %v149
    %v151 = vadd.f32 %v141, %v150
    %152 = vset.pattern.permute.xlu0 2
    %153 = vperm.xlu0 %152, %v124
    %v154 = vpop.permute.xlu0 %153
    %v156 = vlaneseq
    %v157 = vshrl.u32 %v156, 7
    %v158 = vsub.s32 2, %v157
    %v159 = vrot.slane %v123, %v158
    %v160 = vmul.f32 %v154, %v159
    %v161 = vadd.f32 %v151, %v160
    %162 = vset.pattern.permute.xlu0 3
    %163 = vperm.xlu0 %162, %v124
    %v164 = vpop.permute.xlu0 %163
    %v166 = vlaneseq
    %v167 = vshrl.u32 %v166, 7
    %v168 = vsub.s32 3, %v167
    %v169 = vrot.slane %v123, %v168
    %v170 = vmul.f32 %v164, %v169
    %v171 = vadd.f32 %v161, %v170
    %172 = vset.pattern.permute.xlu0 4
    %173 = vperm.xlu0 %172, %v124
    %v174 = vpop.permute.xlu0 %173
    %v176 = vlaneseq
    %v177 = vshrl.u32 %v176, 7
    %v178 = vsub.s32 4, %v177
    %v179 = vrot.slane %v123, %v178
    %v180 = vmul.f32 %v174, %v179
    %v181 = vadd.f32 %v171, %v180
    %182 = vset.pattern.permute.xlu0 5
    %183 = vperm.xlu0 %182, %v124
    %v184 = vpop.permute.xlu0 %183
    %v186 = vlaneseq
    %v187 = vshrl.u32 %v186, 7
    %v188 = vsub.s32 5, %v187
    %v189 = vrot.slane %v123, %v188
    %v190 = vmul.f32 %v184, %v189
    %v191 = vadd.f32 %v181, %v190
    %v192 = vxor.u32 %v191, 2147483648
    %v193 = vmul.f32 %v192, 1.442695
    %v194 = vpow.pop %v193
    %v195 = vadd.f32 %v194, 1.0
    %v196 = vrcp.pop %v195
    %v197 = vmul.f32 1.0, %v196
    %v198 = vld [vmem:[%s5] sm:$0x1]
    %v199 = vld [vmem:[#allocation2] sm:$0x1]
    %201 = vset.pattern.permute.xlu0 0
    %202 = vperm.xlu0 %201, %v198
    %v203 = vpop.permute.xlu0 %202
    %v205 = vlaneseq
    %v206 = vshrl.u32 %v205, 7
    %v207 = vsub.s32 0, %v206
    %v208 = vrot.slane %v203, %v207
    %v209 = vmul.f32 %v208, %v197
    %211 = vset.pattern.permute.xlu0 0
    %212 = vperm.xlu0 %211, %v199
    %v213 = vpop.permute.xlu0 %212
    %v215 = vlaneseq
    %v216 = vshrl.u32 %v215, 7
    %v217 = vsub.s32 0, %v216
    %v218 = vrot.slane %v213, %v217
    %v219 = vadd.f32 %v218, %v209
    %220 = vset.pattern.permute.xlu0 1
    %221 = vperm.xlu0 %220, %v198
    %v222 = vpop.permute.xlu0 %221
    %v224 = vlaneseq
    %v225 = vshrl.u32 %v224, 7
    %v226 = vsub.s32 0, %v225
    %v227 = vrot.slane %v222, %v226
    %v228 = vmul.f32 %v227, %v197
    %v230 = vrot.slane %v228, 1
    %v232 = vadd.f32 %v219, %v230
    %233 = vset.pattern.permute.xlu0 2
    %234 = vperm.xlu0 %233, %v198
    %v235 = vpop.permute.xlu0 %234
    %v237 = vlaneseq
    %v238 = vshrl.u32 %v237, 7
    %v239 = vsub.s32 0, %v238
    %v240 = vrot.slane %v235, %v239
    %v241 = vmul.f32 %v240, %v197
    %v243 = vrot.slane %v241, 2
    %v245 = vadd.f32 %v232, %v243
    %246 = vset.pattern.permute.xlu0 3
    %247 = vperm.xlu0 %246, %v198
    %v248 = vpop.permute.xlu0 %247
    %v250 = vlaneseq
    %v251 = vshrl.u32 %v250, 7
    %v252 = vsub.s32 0, %v251
    %v253 = vrot.slane %v248, %v252
    %v254 = vmul.f32 %v253, %v197
    %v256 = vrot.slane %v254, 3
    %v258 = vadd.f32 %v245, %v256
    %v259 = vxor.u32 %v258, 2147483648
    %v260 = vmul.f32 %v259, 1.442695
    %v261 = vpow.pop %v260
    %v262 = vadd.f32 %v261, 1.0
    %v263 = vrcp.pop %v262
    %v264 = vmul.f32 1.0, %v263
    %265 = vst [vmem:[#allocation3] sm:$0x1] %v264
    // Predicated region
    $region30: #{tpu_custom_call.1} parent=1 // pred_check
      _
    $region31: #{tpu_custom_call.1} parent=1 // pred_check_branch
      %267 = sbr.rel (0) target = $region33
    $region32: #{tpu_custom_call.1} parent=1 // pred_region
      %s269 = ssub.s32 16, 16
      %270 = vsyncadd [#allocation4], %s269
      %s272 = sshll.u32 [#allocation3], 4
      %s273 = int_to_ptr.vmem [resolvable:$true] %s272
      %275 = dma.vmem_to_hbm [thread:$0]  %s273, 16, %s7, [#allocation4]
    $region33: #{tpu_custom_call.1} parent=1 // pred_fallthru
      _
    // Predicated region
    $region34: #{tpu_custom_call.1} parent=1 // pred_check
      _
    $region35: #{tpu_custom_call.1} parent=1 // pred_check_branch
      %277 = sbr.rel (0) target = $region37
    $region36: #{tpu_custom_call.1} parent=1 // pred_region
      %278 = dma.done [#allocation4], 16
    $region37: #{tpu_custom_call.1} parent=1 // pred_fallthru
      _
    %279 = vsyncpa [#allocation4], 1

</llo_original>
